<compile_context>
chip_gen: v5e
topology: v5e:2x2
jax: 0.10.0
libtpu: 0.0.40
codegen_flags: <defaults>
</compile_context>

<pallas_src>
import functools

import jax
import jax.numpy as jnp
from jax.experimental import pallas as pl
from jax.experimental.pallas import tpu as pltpu


def _round_up(x, m):
    return (x + m - 1) // m * m


def _vmem_budget_bytes():
    """Generation-aware VMEM cap: ~48 MiB on v7x (64 MiB/TC), ~100 MiB on v5e/v6e."""
    phys = 64 << 20
    try:
        info = pltpu.get_tpu_info()
        phys = int(getattr(info, "vmem_capacity_bytes", phys))
    except Exception:
        pass
    return int(min(max(phys - (16 << 20), 16 << 20), 100 << 20))


def skipgram_kernel(x_ref, w_ref, b_ref, out_ref):
    # x_ref  : (tb, d_pad)     bf16 gathered embeddings for this batch tile
    # w_ref  : (d_pad, n_pad)  bf16 transposed linear weight (resident, 1-buffered)
    # b_ref  : (1, n_pad)      f32 bias; pad vocab columns pre-masked to -1e30
    # out_ref: (tb, n_pad)     f32 lane-dense log-probability tile
    logits = jnp.dot(x_ref[...], w_ref[...],
                     preferred_element_type=jnp.float32)       # MXU, f32 accumulate
    logits = logits + b_ref[...]

    # Numerically stable log_softmax over the last axis (== torch dim=1).
    # Pad columns carry -1e30 from the pre-masked bias, so exp() underflows to
    # 0 and they never perturb the normalization; every row has at least one
    # real finite column, so the row max is finite (no inf-inf NaN).
    m = jnp.max(logits, axis=-1, keepdims=True)
    shifted = logits - m
    sumexp = jnp.sum(jnp.exp(shifted), axis=-1, keepdims=True)
    out_ref[...] = (shifted - jnp.log(sumexp)).astype(out_ref.dtype)


def prepare_skip_gram_params(emb_table, weight, bias, *, compute_dtype=jnp.bfloat16):
    """One-time (outside the hot path) pad / transpose / cast of the parameters.

    emb_table : (N, D) nn.Embedding weight
    weight    : (N, D) nn.Linear weight
    bias      : (N,)   nn.Linear bias
    """
    n, d = emb_table.shape
    sub = 8 if jnp.dtype(compute_dtype).itemsize == 4 else 16
    d_pad = _round_up(d, sub)        # sublane-aligned only; no wasteful 128 pad
    n_pad = _round_up(n, 128)        # lane-dense weight columns / output

    emb_p = jnp.zeros((n, d_pad), compute_dtype).at[:, :d].set(
        emb_table.astype(compute_dtype))
    w_t = jnp.zeros((d_pad, n_pad), compute_dtype).at[:d, :n].set(
        weight.astype(compute_dtype).T)
    # Pre-mask pad vocab columns with a large finite negative sentinel.
    b_p = jnp.full((1, n_pad), -1e30, jnp.float32).at[0, :n].set(
        bias.astype(jnp.float32))
    return emb_p, w_t, b_p


@functools.partial(jax.jit, static_argnames=("n_words",))
def skip_gram_forward(input_word, emb_padded, w_t, bias_padded, *, n_words):
    """Pallas forward pass: log_softmax(Linear(Embedding(input_word)), dim=1)."""
    b = input_word.shape[0]
    _, d_pad = emb_padded.shape
    _, n_pad = w_t.shape
    compute_dtype = w_t.dtype
    itemsize = jnp.dtype(compute_dtype).itemsize
    sub = 8 if itemsize == 4 else 16

    # Embedding lookup as one contiguous gather in the wrapper (D is small, so
    # B tiny per-row in-kernel gather DMAs would be slower).
    # Note: jnp.take clamps out-of-range indices (torch.nn.Embedding errors).
    x = jnp.take(emb_padded, input_word.astype(jnp.int32), axis=0)   # (b, d_pad)

    # Batch tile: as many rows as fit the per-core VMEM budget (cap 512).
    vmem_cap = _vmem_budget_bytes()
    resident = d_pad * n_pad * itemsize + 8 * n_pad * 4   # 1-buffered weight + bias
    per_row = 2 * (d_pad * itemsize + n_pad * 4)          # 2-buffered x + out tiles
    headroom = 4 << 20
    avail = max(vmem_cap - resident - headroom, sub * per_row)
    tb = min(512, max(sub, (avail // per_row) // sub * sub), _round_up(b, sub))
    b_pad = _round_up(b, tb)

    if b_pad != b:
        x = jnp.concatenate(
            [x, jnp.zeros((b_pad - b, d_pad), compute_dtype)], axis=0)

    vmem_needed = resident + tb * per_row + headroom
    vmem_limit = int(min(max(vmem_needed, 8 << 20), vmem_cap))

    grid = (b_pad // tb,)
    out = pl.pallas_call(
        skipgram_kernel,
        out_shape=jax.ShapeDtypeStruct((b_pad, n_pad), jnp.float32),
        grid_spec=pltpu.PrefetchScalarGridSpec(
            num_scalar_prefetch=0,
            grid=grid,
            in_specs=[
                # batch tile of gathered embeddings (streamed, double-buffered)
                pl.BlockSpec((tb, d_pad), lambda i: (i, 0)),
                # full transposed weight, resident across the grid -> 1 buffer
                pl.BlockSpec((d_pad, n_pad), lambda i: (0, 0),
                             pipeline_mode=pl.Buffered(1)),
                # full pre-masked bias, resident -> 1 buffer
                pl.BlockSpec((1, n_pad), lambda i: (0, 0),
                             pipeline_mode=pl.Buffered(1)),
            ],
            out_specs=pl.BlockSpec((tb, n_pad), lambda i: (i, 0)),
        ),
        compiler_params=pltpu.CompilerParams(
            dimension_semantics=("parallel",),
            vmem_limit_bytes=vmem_limit,
        ),
    )(x, w_t, bias_padded)

    return out[:b, :n_words]


def reference_forward(input_word, emb_table, weight, bias, compute_dtype):
    embeds = emb_table[input_word].astype(compute_dtype)
    logits = jnp.dot(embeds, weight.astype(compute_dtype).T,
                     preferred_element_type=jnp.float32) + bias.astype(jnp.float32)
    return jax.nn.log_softmax(logits, axis=1)


if __name__ == "__main__":
    # Small shapes: vocabulary/observations n=64, desired dimension=32, batch=8
    N_WORDS = 64
    DIM = 32
    BATCH = 8

    key = jax.random.PRNGKey(0)
    k_emb, k_w, k_b, k_idx = jax.random.split(key, 4)

    # nn.Embedding default init: N(0, 1)
    emb_table = jax.random.normal(k_emb, (N_WORDS, DIM), dtype=jnp.float32)
    # nn.Linear default init: U(-1/sqrt(D), 1/sqrt(D)) for weight and bias
    bound = 1.0 / (DIM ** 0.5)
    weight = jax.random.uniform(k_w, (N_WORDS, DIM), jnp.float32, -bound, bound)
    bias = jax.random.uniform(k_b, (N_WORDS,), jnp.float32, -bound, bound)
    input_word = jax.random.randint(k_idx, (BATCH,), 0, N_WORDS, dtype=jnp.int32)

    # One-time parameter prep (pad / transpose / bf16 cast), outside the hot path.
    emb_p, w_t, b_p = prepare_skip_gram_params(emb_table, weight, bias)

    log_probs = skip_gram_forward(input_word, emb_p, w_t, b_p, n_words=N_WORDS)
    log_probs = jax.block_until_ready(log_probs)

    assert log_probs.shape == (BATCH, N_WORDS)

    # Tight check against a reference with the same bf16-input / f32-accumulate path.
    ref_bf16 = reference_forward(input_word, emb_table, weight, bias, jnp.bfloat16)
    assert jnp.allclose(log_probs, ref_bf16, atol=2e-3, rtol=2e-3), (
        float(jnp.max(jnp.abs(log_probs - ref_bf16))))
    # Looser sanity check against the pure-f32 reference.
    ref_f32 = reference_forward(input_word, emb_table, weight, bias, jnp.float32)
    assert jnp.allclose(log_probs, ref_f32, atol=5e-2, rtol=5e-2), (
        float(jnp.max(jnp.abs(log_probs - ref_f32))))

    print("KERNEL_OK")
</pallas_src>

<mosaic_0001>
module attributes {stable_mosaic.version = 11 : i64} {
  func.func @skipgram_kernel(%arg0: i32, %arg1: memref<16x32xbf16, #tpu.memory_space<vmem>>, %arg2: memref<32x128xbf16, #tpu.memory_space<vmem>>, %arg3: memref<1x128xf32, #tpu.memory_space<vmem>>, %arg4: memref<16x128xf32, #tpu.memory_space<vmem>>) attributes {dimension_semantics = [#tpu.dimension_semantics<parallel>], iteration_bounds = array<i64: 1>, scalar_prefetch = 0 : i64, scratch_operands = 0 : i64, tpu.core_type = #tpu.core_type<tc>, window_params = [{transform_indices = @transform_0, window_bounds = array<i64: 16, 32>}, {pipeline_mode = #tpu.pipeline_mode<synchronous>, transform_indices = @transform_1, window_bounds = array<i64: 32, 128>}, {pipeline_mode = #tpu.pipeline_mode<synchronous>, transform_indices = @transform_2, window_bounds = array<i64: 1, 128>}, {transform_indices = @transform_3, window_bounds = array<i64: 16, 128>}]} {
    %c0 = arith.constant 0 : index
    %c0_0 = arith.constant 0 : index
    %0 = vector.load %arg1[%c0, %c0_0] : memref<16x32xbf16, #tpu.memory_space<vmem>>, vector<16x32xbf16>
    %c0_1 = arith.constant 0 : index
    %c0_2 = arith.constant 0 : index
    %1 = vector.load %arg2[%c0_1, %c0_2] : memref<32x128xbf16, #tpu.memory_space<vmem>>, vector<32x128xbf16>
    %cst = arith.constant dense<0.000000e+00> : vector<16x128xf32>
    %2 = tpu.matmul %0, %1, %cst {dimension_numbers = #tpu.dot_dimension_numbers<[1], [0], [0], [1], [0, 0, 1, 1], [], []>} : vector<16x32xbf16>, vector<32x128xbf16>, vector<16x128xf32> -> vector<16x128xf32>
    %c0_3 = arith.constant 0 : index
    %c0_4 = arith.constant 0 : index
    %3 = vector.load %arg3[%c0_3, %c0_4] : memref<1x128xf32, #tpu.memory_space<vmem>>, vector<1x128xf32>
    %4 = vector.broadcast %3 : vector<1x128xf32> to vector<16x128xf32>
    %5 = arith.addf %2, %4 : vector<16x128xf32>
    %cst_5 = arith.constant dense<0xFF800000> : vector<16xf32>
    %6 = vector.multi_reduction <maximumf>, %5, %cst_5 [1] : vector<16x128xf32> to vector<16xf32>
    %7 = vector.shape_cast %6 : vector<16xf32> to vector<16x1xf32>
    %8 = vector.broadcast %7 : vector<16x1xf32> to vector<16x128xf32>
    %9 = arith.subf %5, %8 : vector<16x128xf32>
    %10 = math.exp %9 : vector<16x128xf32>
    %cst_6 = arith.constant dense<0.000000e+00> : vector<16xf32>
    %11 = vector.multi_reduction <add>, %10, %cst_6 [1] : vector<16x128xf32> to vector<16xf32>
    %12 = vector.shape_cast %11 : vector<16xf32> to vector<16x1xf32>
    %13 = math.log %12 : vector<16x1xf32>
    %14 = vector.broadcast %13 : vector<16x1xf32> to vector<16x128xf32>
    %15 = arith.subf %9, %14 : vector<16x128xf32>
    %c0_7 = arith.constant 0 : index
    %c0_8 = arith.constant 0 : index
    %16 = vector.load %arg4[%c0_7, %c0_8] : memref<16x128xf32, #tpu.memory_space<vmem>>, vector<16x128xf32>
    tpu.vector_store %arg4[%c0_7, %c0_8], %15 {strides = array<i32>} : memref<16x128xf32, #tpu.memory_space<vmem>>, vector<16x128xf32>,
    return
  }
  func.func @transform_0(%arg0: i32) -> (i32, i32) {
    %c0_i32 = arith.constant 0 : i32
    %c0_i32_0 = arith.constant 0 : i32
    return %arg0, %c0_i32 : i32, i32
  }
  func.func @transform_1(%arg0: i32) -> (i32, i32) {
    %c0_i32 = arith.constant 0 : i32
    %c0_i32_0 = arith.constant 0 : i32
    %c0_i32_1 = arith.constant 0 : i32
    return %c0_i32, %c0_i32_0 : i32, i32
  }
  func.func @transform_2(%arg0: i32) -> (i32, i32) {
    %c0_i32 = arith.constant 0 : i32
    %c0_i32_0 = arith.constant 0 : i32
    %c0_i32_1 = arith.constant 0 : i32
    return %c0_i32, %c0_i32_0 : i32, i32
  }
  func.func @transform_3(%arg0: i32) -> (i32, i32) {
    %c0_i32 = arith.constant 0 : i32
    %c0_i32_0 = arith.constant 0 : i32
    return %arg0, %c0_i32 : i32, i32
  }
}

</mosaic_0001>

<llo_original>
// kernel: skip_gram_forward.1
$region0: #{skip_gram_forward.1}
  #allocation0 [shape = 'u32[]', space=smem, size = 0x4, offset = 0x4, fixed_abs, tag = 'smem constant byte address 0x4 - core index']
  #allocation1 [shape = 'u32[72,128]{1,0:T(1,128)}', space=vmem, size = 0x9000, scoped, tag = 'internal scratch']
  %s0 = inlined_call_operand.vmem [shape: bf16[16,32], index: 0, kind: input, shape index: {}]
  %s1 = inlined_call_operand.vmem [shape: bf16[32,128], index: 1, kind: input, shape index: {}]
  %s2 = inlined_call_operand.vmem [shape: f32[1,128], index: 2, kind: input, shape index: {}]
  %s3 = inlined_call_operand.vmem [shape: f32[16,128], index: 3, kind: output, shape index: {}]
  %s4 = sld [smem:[#allocation0]]
  $region22: #{skip_gram_forward.1} parent=0
    _
  %s6 = ssub.s32 1, %s4
  %s7 = scalar_select 0, %s6, %s4
  // Predicated region
  $region2: #{skip_gram_forward.1} parent=0 // pred_check
    _
  $region3: #{skip_gram_forward.1} parent=0 // pred_check_branch
    %9 = sbr.rel (0) target = $region5
  $region4: #{skip_gram_forward.1} parent=0 // pred_region
    _
  $region5: #{skip_gram_forward.1} parent=0 // pred_fallthru
    _
  // Predicated region
  $region6: #{skip_gram_forward.1} parent=0 // pred_check
    _
  $region7: #{skip_gram_forward.1} parent=0 // pred_check_branch
    %11 = sbr.rel (0) target = $region9
  $region8: #{skip_gram_forward.1} parent=0 // pred_region
    _
  $region9: #{skip_gram_forward.1} parent=0 // pred_fallthru
    _
  // Predicated region
  $region10: #{skip_gram_forward.1} parent=0 // pred_check
    _
  $region11: #{skip_gram_forward.1} parent=0 // pred_check_branch
    %13 = sbr.rel (0) target = $region13
  $region12: #{skip_gram_forward.1} parent=0 // pred_region
    _
  $region13: #{skip_gram_forward.1} parent=0 // pred_fallthru
    _
  %v15 = vld [vmem:[%s0] sm:$0xf]
  %v16 = vld [vmem:[%s0 + $0x4] sm:$0xf]
  %v17 = vld [vmem:[%s1] sm:$0xf]
  %v18 = vld [vmem:[%s1 + $0x4] sm:$0xf]
  %v19 = vld [vmem:[%s1 + $0x8] sm:$0xf]
  %v20 = vld [vmem:[%s1 + $0xc] sm:$0xf]
  %v21 = vld [vmem:[%s2] sm:$0x1]
  %v23 = vperm.slane %v21, 0
  %v27 = vunpack.c.l.b16 %v15
  %v28 = vunpack.c.l.b16 %v16
  %v29 = vpack.c.b16 %v28, %v27
  %v34 = vunpack.c.l.b16 %v17
  %v35 = vunpack.c.l.b16 %v18
  %v36 = vunpack.c.l.b16 %v19
  %v37 = vunpack.c.l.b16 %v20
  %v38 = vpack.c.b16 %v35, %v34
  %v39 = vpack.c.b16 %v37, %v36
  %vm42 = vcmask 261120
  %v44 = vsel %vm42, %v29, 0
  %46 = vmatpush.bf16.msra.mxu0 0
  %47 = vmatpush.bf16.msra.mxu0 0
  %48 = vmatpush.bf16.msra.mxu0 0
  %49 = vmatpush.bf16.msra.mxu0 0
  %50 = vmatpush.bf16.msra.mxu0 0
  %51 = vmatpush.bf16.msra.mxu0 0
  %52 = vmatpush.bf16.msra.mxu0 %v39
  %53 = vmatpush.bf16.msra.mxu0 %v38
  %54 = vmatmul.bf16.gmra.mxu0 %v44
  %v55 = vpop.f32.mrf.mxu0
  %v56 = vadd.f32 %v23, %v55
  %v57 = vpop.f32.mrf.mxu0
  %v58 = vadd.f32 %v23, %v57
  %59 = vdwg.mxu0
  %60 = vmax.xlane.f32.xlu0 %v56
  %v61 = vpop.xlane.xlu0 %60
  %62 = vmax.xlane.f32.xlu0 %v58
  %v63 = vpop.xlane.xlu0 %62
  %v64 = vsub.f32 %v56, %v61
  %v65 = vsub.f32 %v58, %v63
  %v66 = vmul.f32 %v64, 1.442695
  %v67 = vpow.pop %v66
  %v68 = vmul.f32 %v65, 1.442695
  %v69 = vpow.pop %v68
  %70 = vadd.xlane.f32.xlu0 %v67
  %v71 = vpop.xlane.xlu0 %70
  %72 = vadd.xlane.f32.xlu0 %v69
  %v73 = vpop.xlane.xlu0 %72
  %v74 = vlog2.pop %v71
  %v75 = vmul.f32 %v74, 0.6931472
  %v76 = vlog2.pop %v73
  %v77 = vmul.f32 %v76, 0.6931472
  %v78 = vsub.f32 %v64, %v75
  %v79 = vsub.f32 %v65, %v77
  %80 = vst [vmem:[%s3] sm:$0xff] %v78
  %81 = vst [vmem:[%s3 + $0x8] sm:$0xff] %v79
  // Predicated region
  $region14: #{skip_gram_forward.1} parent=0 // pred_check
    _
  $region15: #{skip_gram_forward.1} parent=0 // pred_check_branch
    %83 = sbr.rel (0) target = $region17
  $region16: #{skip_gram_forward.1} parent=0 // pred_region
    _
  $region17: #{skip_gram_forward.1} parent=0 // pred_fallthru
    _
  // Predicated region
  $region18: #{skip_gram_forward.1} parent=0 // pred_check
    _
  $region19: #{skip_gram_forward.1} parent=0 // pred_check_branch
    %85 = sbr.rel (0) target = $region21
  $region20: #{skip_gram_forward.1} parent=0 // pred_region
    _
  $region21: #{skip_gram_forward.1} parent=0 // pred_fallthru
    _

</llo_original>
